<compile_context>
chip_gen: v7x
topology: tpu7x:2x2x1
jax: 0.10.0
libtpu: 0.0.40
codegen_flags: <defaults>
</compile_context>

<pallas_src>
import inspect

import jax
import jax.numpy as jnp
from jax.experimental import pallas as pl
from jax.experimental.pallas import tpu as pltpu

LANE = 128
SUBLANE_BF16 = 16  # bf16 packs 16 sublanes per vreg


def _round_up(x: int, m: int) -> int:
    return (x + m - 1) // m * m


def _supports_buffered_blockspec() -> bool:
    if not hasattr(pl, "Buffered"):
        return False
    try:
        return "pipeline_mode" in inspect.signature(pl.BlockSpec).parameters
    except Exception:
        return False


_HAS_BUFFERED = _supports_buffered_blockspec()


def _resident_spec(block_shape, index_map, single_buffer: bool):
    """BlockSpec for a block whose index never changes across the grid."""
    if single_buffer and _HAS_BUFFERED:
        try:
            return pl.BlockSpec(block_shape, index_map,
                                pipeline_mode=pl.Buffered(1))
        except Exception:
            pass
    return pl.BlockSpec(block_shape, index_map)


def _tpu_resources():
    """(num_tensorcores, vmem_capacity_bytes) with conservative fallbacks."""
    num_cores = 1
    vmem_cap = 64 * 1024 * 1024  # v7x per-TC capacity: safe lower bound
    try:
        info = pltpu.get_tpu_info()
        vmem_cap = int(getattr(info, "vmem_capacity_bytes", vmem_cap))
        for attr in ("num_cores", "tensor_cores_per_chip", "num_tensorcores",
                     "cores_per_chip"):
            v = getattr(info, attr, None)
            if v:
                num_cores = max(num_cores, int(v))
                break
    except Exception:
        pass
    try:
        num_cores = max(num_cores,
                        int(getattr(jax.devices()[0], "num_cores", 1) or 1))
    except Exception:
        pass
    return num_cores, vmem_cap


def _make_mlp_kernel(num_hidden: int):
    """Kernel: `num_hidden` x (Linear -> ReLU) backbone, then head Linear."""

    def kernel(head_idx_ref, x_ref, *refs):
        del head_idx_ref  # only used by the index_maps (head selection)
        o_ref = refs[-1]
        params = refs[:-1]  # w0, b0, ..., w_{L-1}, b_{L-1}, w_head, b_head

        h = x_ref[...]  # bf16 input, already lane-dense
        for i in range(num_hidden):  # static unroll
            w = params[2 * i][...]        # bf16 [in_p, hid_p]
            b = params[2 * i + 1][...]    # f32  [1, hid_p]
            acc = jnp.dot(h, w, preferred_element_type=jnp.float32)  # MXU
            hf = jnp.maximum(acc + b, 0.0)   # bias + ReLU in f32 (VPU)
            h = hf.astype(jnp.bfloat16)      # cast only at the MXU boundary
        wh = params[2 * num_hidden][...]      # bf16 [hid_p, out_p]
        bh = params[2 * num_hidden + 1][...]  # f32  [1, out_p]
        out = jnp.dot(h, wh, preferred_element_type=jnp.float32) + bh
        o_ref[...] = out.astype(o_ref.dtype)

    return kernel


def pack_params(backbone_params, head_params):
    """One-time packing: bf16 lane-dense weights, f32 padded biases, stacked
    heads.  Call once and cache the result; this is the HBM-heavy work that
    was previously (wastefully) re-done on every forward call."""
    num_hidden = len(backbone_params)
    num_heads = len(head_params)
    input_dim = backbone_params[0][0].shape[0]
    hidden_dim = backbone_params[0][0].shape[1]
    output_dim = head_params[0][0].shape[1]

    in_p = _round_up(input_dim, LANE)
    hid_p = _round_up(hidden_dim, LANE)
    out_p = _round_up(output_dim, LANE)

    backbone_flat = []
    for li, (w, b) in enumerate(backbone_params):
        fi = in_p if li == 0 else hid_p
        wp = jnp.zeros((fi, hid_p), jnp.bfloat16)
        wp = wp.at[:w.shape[0], :w.shape[1]].set(w.astype(jnp.bfloat16))
        bp = jnp.zeros((1, hid_p), jnp.float32)
        bp = bp.at[:, :b.shape[1]].set(b.astype(jnp.float32))
        backbone_flat.extend([wp, bp])

    # Stack all heads so head_idx can be a dynamic scalar (scalar prefetch).
    wh_stack = jnp.zeros((num_heads, hid_p, out_p), jnp.bfloat16)
    bh_stack = jnp.zeros((num_heads, 1, out_p), jnp.float32)
    for hi, (w, b) in enumerate(head_params):
        wh_stack = wh_stack.at[hi, :w.shape[0], :w.shape[1]].set(
            w.astype(jnp.bfloat16))
        bh_stack = bh_stack.at[hi, :, :b.shape[1]].set(b.astype(jnp.float32))

    dims = dict(input_dim=input_dim, hidden_dim=hidden_dim,
                output_dim=output_dim, in_p=in_p, hid_p=hid_p, out_p=out_p,
                num_hidden=num_hidden, num_heads=num_heads)
    return dict(backbone=tuple(backbone_flat),
                wh_stack=wh_stack, bh_stack=bh_stack, dims=dims)


def discriminative_naive_forward(x, packed, head_idx, *,
                                 batch_tile: int = 512,
                                 out_dtype=jnp.float32,
                                 single_buffer_resident: bool = True):
    """Forward pass equivalent to DiscriminativeNaive.forward(x, head_idx).

    x:        [batch, input_dim] float array
    packed:   output of pack_params() (pack once, reuse across calls)
    head_idx: head selector; pass a jnp.int32 scalar to avoid retracing per
              head (a Python int also works).
    """
    dims = packed["dims"]
    input_dim, output_dim = dims["input_dim"], dims["output_dim"]
    in_p, hid_p, out_p = dims["in_p"], dims["hid_p"], dims["out_p"]
    num_hidden = dims["num_hidden"]
    backbone_flat = packed["backbone"]
    wh_stack, bh_stack = packed["wh_stack"], packed["bh_stack"]

    batch = x.shape[0]
    assert x.shape[1] == input_dim

    num_cores, vmem_cap = _tpu_resources()

    # Batch tiling: minimize padding waste, 16-row aligned (full bf16 vregs),
    # and >= num_cores grid steps when there is enough work (v7x megacore).
    n_tiles = max(1, pl.cdiv(batch, batch_tile))
    if num_cores > 1 and batch >= num_cores * 128:
        n_tiles = _round_up(max(n_tiles, num_cores), num_cores)
    tb = _round_up(pl.cdiv(batch, n_tiles), SUBLANE_BF16)
    batch_p = n_tiles * tb
    grid = (n_tiles,)

    # Pad + cast x to bf16 (halves input DMA bytes; same numerics as the
    # reference, which feeds bf16 into the first matmul anyway).
    if batch_p == batch and in_p == input_dim:
        x_p = x.astype(jnp.bfloat16)
    else:
        x_p = jnp.zeros((batch_p, in_p), jnp.bfloat16)
        x_p = x_p.at[:batch, :input_dim].set(x.astype(jnp.bfloat16))

    head_idx_arr = jnp.asarray(head_idx, dtype=jnp.int32).reshape((1,))

    # VMEM budget derived from the actual footprint + detected capacity.
    out_itemsize = 2 if out_dtype == jnp.bfloat16 else 4
    resident_bufs = 1 if (single_buffer_resident and _HAS_BUFFERED) else 2
    resident_bytes = resident_bufs * (
        sum(int(p.size) * p.dtype.itemsize for p in backbone_flat)
        + hid_p * out_p * 2 + out_p * 4)
    io_bytes = 2 * tb * in_p * 2 + 2 * tb * out_p * out_itemsize
    act_bytes = 3 * tb * max(in_p, hid_p, out_p) * 4
    vmem_need = resident_bytes + io_bytes + act_bytes
    vmem_limit = int(min(max(int(1.5 * vmem_need) + (8 << 20), 32 << 20),
                         max(vmem_cap - (8 << 20), 32 << 20)))
    # TODO(synk): if resident bf16 weights ever exceed the per-core VMEM
    # budget (very large hidden_dim on v7x), add a K/N grid axis and stream
    # weight tiles instead of keeping everything resident.

    def run(single_buffer: bool):
        in_specs = [pl.BlockSpec((tb, in_p), lambda i, hidx: (i, 0))]
        for p in backbone_flat:  # resident weights/biases: constant index
            in_specs.append(
                _resident_spec(p.shape, lambda i, hidx: (0, 0), single_buffer))
        in_specs.append(_resident_spec(       # selected head weight
            (None, hid_p, out_p), lambda i, hidx: (hidx[0], 0, 0),
            single_buffer))
        in_specs.append(_resident_spec(       # selected head bias
            (None, 1, out_p), lambda i, hidx: (hidx[0], 0, 0), single_buffer))
        out_spec = pl.BlockSpec((tb, out_p), lambda i, hidx: (i, 0))

        return pl.pallas_call(
            _make_mlp_kernel(num_hidden),
            out_shape=jax.ShapeDtypeStruct((batch_p, out_p), out_dtype),
            grid_spec=pltpu.PrefetchScalarGridSpec(
                num_scalar_prefetch=1,
                grid=grid,
                in_specs=in_specs,
                out_specs=out_spec,
            ),
            compiler_params=pltpu.CompilerParams(
                dimension_semantics=("parallel",),
                vmem_limit_bytes=vmem_limit,
            ),
        )(head_idx_arr, x_p, *backbone_flat, wh_stack, bh_stack)

    if single_buffer_resident and _HAS_BUFFERED:
        try:
            out_padded = run(True)
        except Exception:
            # Fallback for JAX versions where pipeline_mode=pl.Buffered(1)
            # is not supported by the TPU pallas_call pipeliner.
            out_padded = run(False)
    else:
        out_padded = run(False)

    # Pads are exact zeros -> slicing them off is exact; skip when unpadded.
    if batch_p == batch and out_p == output_dim:
        return out_padded
    return out_padded[:batch, :output_dim]


def init_params(key, input_dim, output_dim, hidden_dim, num_hidden, num_heads):
    """Matches reset_parameters(): Normal(0, 0.1) for W and b (f32 masters)."""
    backbone = []
    for h in range(num_hidden):
        in_f = input_dim if h == 0 else hidden_dim
        key, kw, kb = jax.random.split(key, 3)
        w = 0.1 * jax.random.normal(kw, (in_f, hidden_dim), jnp.float32)
        b = 0.1 * jax.random.normal(kb, (1, hidden_dim), jnp.float32)
        backbone.append((w, b))
    heads = []
    for _ in range(num_heads):
        key, kw, kb = jax.random.split(key, 3)
        w = 0.1 * jax.random.normal(kw, (hidden_dim, output_dim), jnp.float32)
        b = 0.1 * jax.random.normal(kb, (1, output_dim), jnp.float32)
        heads.append((w, b))
    return backbone, heads


def reference_forward(x, backbone_params, head_params, head_idx):
    """Pure-JAX reference with the same bf16-in / f32-accumulate numerics."""
    h = x.astype(jnp.float32)
    for w, b in backbone_params:
        h = jnp.dot(h.astype(jnp.bfloat16), w.astype(jnp.bfloat16),
                    preferred_element_type=jnp.float32) + b
        h = jnp.maximum(h, 0.0)
    wh, bh = head_params[head_idx]
    return jnp.dot(h.astype(jnp.bfloat16), wh.astype(jnp.bfloat16),
                   preferred_element_type=jnp.float32) + bh


if __name__ == "__main__":
    # Small shapes consistent with the module: an MLP on flat features.
    batch, input_dim, hidden_dim, output_dim = 16, 32, 32, 8
    num_hidden, num_heads = 2, 3

    key = jax.random.PRNGKey(0)
    key, kx = jax.random.split(key)
    x = jax.random.normal(kx, (batch, input_dim), jnp.float32)

    backbone_params, head_params = init_params(
        key, input_dim, output_dim, hidden_dim, num_hidden, num_heads)

    # Pack / pad / cast parameters once (cached; not part of the per-call path).
    packed = pack_params(backbone_params, head_params)

    head_idx = jnp.int32(1)  # dynamic head selection: no retrace per head
    out = discriminative_naive_forward(x, packed, head_idx)
    out = jax.block_until_ready(out)

    ref = reference_forward(x, backbone_params, head_params, 1)
    assert out.shape == (batch, output_dim)
    assert jnp.allclose(out, ref, atol=2e-3, rtol=2e-3), "mismatch vs reference"

    print("KERNEL_OK")
</pallas_src>

<mosaic_0001>
module attributes {stable_mosaic.version = 11 : i64} {
  func.func @kernel(%arg0: i32, %arg1: memref<1xi32, #tpu.memory_space<smem>>, %arg2: memref<16x128xbf16, #tpu.memory_space<vmem>>, %arg3: memref<128x128xbf16, #tpu.memory_space<vmem>>, %arg4: memref<1x128xf32, #tpu.memory_space<vmem>>, %arg5: memref<128x128xbf16, #tpu.memory_space<vmem>>, %arg6: memref<1x128xf32, #tpu.memory_space<vmem>>, %arg7: memref<1x128x128xbf16, #tpu.memory_space<vmem>>, %arg8: memref<1x1x128xf32, #tpu.memory_space<vmem>>, %arg9: memref<16x128xf32, #tpu.memory_space<vmem>>) attributes {dimension_semantics = [#tpu.dimension_semantics<parallel>], iteration_bounds = array<i64: 1>, scalar_prefetch = 1 : i64, scratch_operands = 0 : i64, tpu.core_type = #tpu.core_type<tc>, window_params = [{transform_indices = @transform_0, window_bounds = array<i64: 16, 128>}, {pipeline_mode = #tpu.pipeline_mode<synchronous>, transform_indices = @transform_1, window_bounds = array<i64: 128, 128>}, {pipeline_mode = #tpu.pipeline_mode<synchronous>, transform_indices = @transform_2, window_bounds = array<i64: 1, 128>}, {pipeline_mode = #tpu.pipeline_mode<synchronous>, transform_indices = @transform_3, window_bounds = array<i64: 128, 128>}, {pipeline_mode = #tpu.pipeline_mode<synchronous>, transform_indices = @transform_4, window_bounds = array<i64: 1, 128>}, {pipeline_mode = #tpu.pipeline_mode<synchronous>, transform_indices = @transform_5, window_bounds = array<i64: 1, 128, 128>}, {pipeline_mode = #tpu.pipeline_mode<synchronous>, transform_indices = @transform_6, window_bounds = array<i64: 1, 1, 128>}, {transform_indices = @transform_7, window_bounds = array<i64: 16, 128>}]} {
    %c0 = arith.constant 0 : index
    %c0_0 = arith.constant 0 : index
    %0 = vector.load %arg2[%c0, %c0_0] : memref<16x128xbf16, #tpu.memory_space<vmem>>, vector<16x128xbf16>
    %c0_1 = arith.constant 0 : index
    %c0_2 = arith.constant 0 : index
    %1 = vector.load %arg3[%c0_1, %c0_2] : memref<128x128xbf16, #tpu.memory_space<vmem>>, vector<128x128xbf16>
    %c0_3 = arith.constant 0 : index
    %c0_4 = arith.constant 0 : index
    %2 = vector.load %arg4[%c0_3, %c0_4] : memref<1x128xf32, #tpu.memory_space<vmem>>, vector<1x128xf32>
    %cst = arith.constant dense<0.000000e+00> : vector<16x128xf32>
    %3 = tpu.matmul %0, %1, %cst {dimension_numbers = #tpu.dot_dimension_numbers<[1], [0], [0], [1], [0, 0, 1, 1], [], []>} : vector<16x128xbf16>, vector<128x128xbf16>, vector<16x128xf32> -> vector<16x128xf32>
    %4 = vector.broadcast %2 : vector<1x128xf32> to vector<16x128xf32>
    %5 = arith.addf %3, %4 : vector<16x128xf32>
    %cst_5 = arith.constant 0.000000e+00 : f32
    %6 = vector.broadcast %cst_5 : f32 to vector<16x128xf32>
    %7 = arith.maximumf %5, %6 : vector<16x128xf32>
    %8 = arith.truncf %7 : vector<16x128xf32> to vector<16x128xbf16>
    %c0_6 = arith.constant 0 : index
    %c0_7 = arith.constant 0 : index
    %9 = vector.load %arg5[%c0_6, %c0_7] : memref<128x128xbf16, #tpu.memory_space<vmem>>, vector<128x128xbf16>
    %c0_8 = arith.constant 0 : index
    %c0_9 = arith.constant 0 : index
    %10 = vector.load %arg6[%c0_8, %c0_9] : memref<1x128xf32, #tpu.memory_space<vmem>>, vector<1x128xf32>
    %cst_10 = arith.constant dense<0.000000e+00> : vector<16x128xf32>
    %11 = tpu.matmul %8, %9, %cst_10 {dimension_numbers = #tpu.dot_dimension_numbers<[1], [0], [0], [1], [0, 0, 1, 1], [], []>} : vector<16x128xbf16>, vector<128x128xbf16>, vector<16x128xf32> -> vector<16x128xf32>
    %12 = vector.broadcast %10 : vector<1x128xf32> to vector<16x128xf32>
    %13 = arith.addf %11, %12 : vector<16x128xf32>
    %cst_11 = arith.constant 0.000000e+00 : f32
    %14 = vector.broadcast %cst_11 : f32 to vector<16x128xf32>
    %15 = arith.maximumf %13, %14 : vector<16x128xf32>
    %16 = arith.truncf %15 : vector<16x128xf32> to vector<16x128xbf16>
    %c0_12 = arith.constant 0 : index
    %c0_13 = arith.constant 0 : index
    %c0_14 = arith.constant 0 : index
    %17 = vector.load %arg7[%c0_12, %c0_13, %c0_14] : memref<1x128x128xbf16, #tpu.memory_space<vmem>>, vector<1x128x128xbf16>
    %18 = vector.shape_cast %17 : vector<1x128x128xbf16> to vector<128x128xbf16>
    %c0_15 = arith.constant 0 : index
    %c0_16 = arith.constant 0 : index
    %c0_17 = arith.constant 0 : index
    %19 = vector.load %arg8[%c0_15, %c0_16, %c0_17] : memref<1x1x128xf32, #tpu.memory_space<vmem>>, vector<1x1x128xf32>
    %20 = vector.shape_cast %19 : vector<1x1x128xf32> to vector<1x128xf32>
    %cst_18 = arith.constant dense<0.000000e+00> : vector<16x128xf32>
    %21 = tpu.matmul %16, %18, %cst_18 {dimension_numbers = #tpu.dot_dimension_numbers<[1], [0], [0], [1], [0, 0, 1, 1], [], []>} : vector<16x128xbf16>, vector<128x128xbf16>, vector<16x128xf32> -> vector<16x128xf32>
    %22 = vector.broadcast %20 : vector<1x128xf32> to vector<16x128xf32>
    %23 = arith.addf %21, %22 : vector<16x128xf32>
    %c0_19 = arith.constant 0 : index
    %c0_20 = arith.constant 0 : index
    %24 = vector.load %arg9[%c0_19, %c0_20] : memref<16x128xf32, #tpu.memory_space<vmem>>, vector<16x128xf32>
    tpu.vector_store %arg9[%c0_19, %c0_20], %23 {strides = array<i32>} : memref<16x128xf32, #tpu.memory_space<vmem>>, vector<16x128xf32>,
    return
  }
  func.func @transform_0(%arg0: i32, %arg1: memref<1xi32, #tpu.memory_space<smem>>) -> (i32, i32) {
    %c0_i32 = arith.constant 0 : i32
    %c0_i32_0 = arith.constant 0 : i32
    return %arg0, %c0_i32 : i32, i32
  }
  func.func @transform_1(%arg0: i32, %arg1: memref<1xi32, #tpu.memory_space<smem>>) -> (i32, i32) {
    %c0_i32 = arith.constant 0 : i32
    %c0_i32_0 = arith.constant 0 : i32
    %c0_i32_1 = arith.constant 0 : i32
    return %c0_i32, %c0_i32_0 : i32, i32
  }
  func.func @transform_2(%arg0: i32, %arg1: memref<1xi32, #tpu.memory_space<smem>>) -> (i32, i32) {
    %c0_i32 = arith.constant 0 : i32
    %c0_i32_0 = arith.constant 0 : i32
    %c0_i32_1 = arith.constant 0 : i32
    return %c0_i32, %c0_i32_0 : i32, i32
  }
  func.func @transform_3(%arg0: i32, %arg1: memref<1xi32, #tpu.memory_space<smem>>) -> (i32, i32) {
    %c0_i32 = arith.constant 0 : i32
    %c0_i32_0 = arith.constant 0 : i32
    %c0_i32_1 = arith.constant 0 : i32
    return %c0_i32, %c0_i32_0 : i32, i32
  }
  func.func @transform_4(%arg0: i32, %arg1: memref<1xi32, #tpu.memory_space<smem>>) -> (i32, i32) {
    %c0_i32 = arith.constant 0 : i32
    %c0_i32_0 = arith.constant 0 : i32
    %c0_i32_1 = arith.constant 0 : i32
    return %c0_i32, %c0_i32_0 : i32, i32
  }
  func.func @transform_5(%arg0: i32, %arg1: memref<1xi32, #tpu.memory_space<smem>>) -> (i32, i32, i32) {
    %c0 = arith.constant 0 : index
    %0 = memref.load %arg1[%c0] : memref<1xi32, #tpu.memory_space<smem>>
    %c0_i32 = arith.constant 0 : i32
    %c0_i32_0 = arith.constant 0 : i32
    %c0_i32_1 = arith.constant 0 : i32
    return %0, %c0_i32, %c0_i32_0 : i32, i32, i32
  }
  func.func @transform_6(%arg0: i32, %arg1: memref<1xi32, #tpu.memory_space<smem>>) -> (i32, i32, i32) {
    %c0 = arith.constant 0 : index
    %0 = memref.load %arg1[%c0] : memref<1xi32, #tpu.memory_space<smem>>
    %c0_i32 = arith.constant 0 : i32
    %c0_i32_0 = arith.constant 0 : i32
    %c0_i32_1 = arith.constant 0 : i32
    return %0, %c0_i32, %c0_i32_0 : i32, i32, i32
  }
  func.func @transform_7(%arg0: i32, %arg1: memref<1xi32, #tpu.memory_space<smem>>) -> (i32, i32) {
    %c0_i32 = arith.constant 0 : i32
    %c0_i32_0 = arith.constant 0 : i32
    return %arg0, %c0_i32 : i32, i32
  }
}

module attributes {stable_mosaic.version = 11 : i64} {
  func.func @kernel(%arg0: i32, %arg1: memref<1xi32, #tpu.memory_space<smem>>, %arg2: memref<16x128xbf16, #tpu.memory_space<vmem>>, %arg3: memref<128x128xbf16, #tpu.memory_space<vmem>>, %arg4: memref<1x128xf32, #tpu.memory_space<vmem>>, %arg5: memref<128x128xbf16, #tpu.memory_space<vmem>>, %arg6: memref<1x128xf32, #tpu.memory_space<vmem>>, %arg7: memref<1x128x128xbf16, #tpu.memory_space<vmem>>, %arg8: memref<1x1x128xf32, #tpu.memory_space<vmem>>, %arg9: memref<16x128xf32, #tpu.memory_space<vmem>>) attributes {dimension_semantics = [#tpu.dimension_semantics<parallel>], iteration_bounds = array<i64: 1>, scalar_prefetch = 1 : i64, scratch_operands = 0 : i64, tpu.core_type = #tpu.core_type<tc>, window_params = [{transform_indices = @transform_0, window_bounds = array<i64: 16, 128>}, {pipeline_mode = #tpu.pipeline_mode<synchronous>, transform_indices = @transform_1, window_bounds = array<i64: 128, 128>}, {pipeline_mode = #tpu.pipeline_mode<synchronous>, transform_indices = @transform_2, window_bounds = array<i64: 1, 128>}, {pipeline_mode = #tpu.pipeline_mode<synchronous>, transform_indices = @transform_3, window_bounds = array<i64: 128, 128>}, {pipeline_mode = #tpu.pipeline_mode<synchronous>, transform_indices = @transform_4, window_bounds = array<i64: 1, 128>}, {transform_indices = @transform_5, window_bounds = array<i64: 1, 128, 128>}, {transform_indices = @transform_6, window_bounds = array<i64: 1, 1, 128>}, {transform_indices = @transform_7, window_bounds = array<i64: 16, 128>}]} {
    %c0 = arith.constant 0 : index
    %c0_0 = arith.constant 0 : index
    %0 = vector.load %arg2[%c0, %c0_0] : memref<16x128xbf16, #tpu.memory_space<vmem>>, vector<16x128xbf16>
    %c0_1 = arith.constant 0 : index
    %c0_2 = arith.constant 0 : index
    %1 = vector.load %arg3[%c0_1, %c0_2] : memref<128x128xbf16, #tpu.memory_space<vmem>>, vector<128x128xbf16>
    %c0_3 = arith.constant 0 : index
    %c0_4 = arith.constant 0 : index
    %2 = vector.load %arg4[%c0_3, %c0_4] : memref<1x128xf32, #tpu.memory_space<vmem>>, vector<1x128xf32>
    %cst = arith.constant dense<0.000000e+00> : vector<16x128xf32>
    %3 = tpu.matmul %0, %1, %cst {dimension_numbers = #tpu.dot_dimension_numbers<[1], [0], [0], [1], [0, 0, 1, 1], [], []>} : vector<16x128xbf16>, vector<128x128xbf16>, vector<16x128xf32> -> vector<16x128xf32>
    %4 = vector.broadcast %2 : vector<1x128xf32> to vector<16x128xf32>
    %5 = arith.addf %3, %4 : vector<16x128xf32>
    %cst_5 = arith.constant 0.000000e+00 : f32
    %6 = vector.broadcast %cst_5 : f32 to vector<16x128xf32>
    %7 = arith.maximumf %5, %6 : vector<16x128xf32>
    %8 = arith.truncf %7 : vector<16x128xf32> to vector<16x128xbf16>
    %c0_6 = arith.constant 0 : index
    %c0_7 = arith.constant 0 : index
    %9 = vector.load %arg5[%c0_6, %c0_7] : memref<128x128xbf16, #tpu.memory_space<vmem>>, vector<128x128xbf16>
    %c0_8 = arith.constant 0 : index
    %c0_9 = arith.constant 0 : index
    %10 = vector.load %arg6[%c0_8, %c0_9] : memref<1x128xf32, #tpu.memory_space<vmem>>, vector<1x128xf32>
    %cst_10 = arith.constant dense<0.000000e+00> : vector<16x128xf32>
    %11 = tpu.matmul %8, %9, %cst_10 {dimension_numbers = #tpu.dot_dimension_numbers<[1], [0], [0], [1], [0, 0, 1, 1], [], []>} : vector<16x128xbf16>, vector<128x128xbf16>, vector<16x128xf32> -> vector<16x128xf32>
    %12 = vector.broadcast %10 : vector<1x128xf32> to vector<16x128xf32>
    %13 = arith.addf %11, %12 : vector<16x128xf32>
    %cst_11 = arith.constant 0.000000e+00 : f32
    %14 = vector.broadcast %cst_11 : f32 to vector<16x128xf32>
    %15 = arith.maximumf %13, %14 : vector<16x128xf32>
    %16 = arith.truncf %15 : vector<16x128xf32> to vector<16x128xbf16>
    %c0_12 = arith.constant 0 : index
    %c0_13 = arith.constant 0 : index
    %c0_14 = arith.constant 0 : index
    %17 = vector.load %arg7[%c0_12, %c0_13, %c0_14] : memref<1x128x128xbf16, #tpu.memory_space<vmem>>, vector<1x128x128xbf16>
    %18 = vector.shape_cast %17 : vector<1x128x128xbf16> to vector<128x128xbf16>
    %c0_15 = arith.constant 0 : index
    %c0_16 = arith.constant 0 : index
    %c0_17 = arith.constant 0 : index
    %19 = vector.load %arg8[%c0_15, %c0_16, %c0_17] : memref<1x1x128xf32, #tpu.memory_space<vmem>>, vector<1x1x128xf32>
    %20 = vector.shape_cast %19 : vector<1x1x128xf32> to vector<1x128xf32>
    %cst_18 = arith.constant dense<0.000000e+00> : vector<16x128xf32>
    %21 = tpu.matmul %16, %18, %cst_18 {dimension_numbers = #tpu.dot_dimension_numbers<[1], [0], [0], [1], [0, 0, 1, 1], [], []>} : vector<16x128xbf16>, vector<128x128xbf16>, vector<16x128xf32> -> vector<16x128xf32>
    %22 = vector.broadcast %20 : vector<1x128xf32> to vector<16x128xf32>
    %23 = arith.addf %21, %22 : vector<16x128xf32>
    %c0_19 = arith.constant 0 : index
    %c0_20 = arith.constant 0 : index
    %24 = vector.load %arg9[%c0_19, %c0_20] : memref<16x128xf32, #tpu.memory_space<vmem>>, vector<16x128xf32>
    tpu.vector_store %arg9[%c0_19, %c0_20], %23 {strides = array<i32>} : memref<16x128xf32, #tpu.memory_space<vmem>>, vector<16x128xf32>,
    return
  }
  func.func @transform_0(%arg0: i32, %arg1: memref<1xi32, #tpu.memory_space<smem>>) -> (i32, i32) {
    %c0_i32 = arith.constant 0 : i32
    %c0_i32_0 = arith.constant 0 : i32
    return %arg0, %c0_i32 : i32, i32
  }
  func.func @transform_1(%arg0: i32, %arg1: memref<1xi32, #tpu.memory_space<smem>>) -> (i32, i32) {
    %c0_i32 = arith.constant 0 : i32
    %c0_i32_0 = arith.constant 0 : i32
    %c0_i32_1 = arith.constant 0 : i32
    return %c0_i32, %c0_i32_0 : i32, i32
  }
  func.func @transform_2(%arg0: i32, %arg1: memref<1xi32, #tpu.memory_space<smem>>) -> (i32, i32) {
    %c0_i32 = arith.constant 0 : i32
    %c0_i32_0 = arith.constant 0 : i32
    %c0_i32_1 = arith.constant 0 : i32
    return %c0_i32, %c0_i32_0 : i32, i32
  }
  func.func @transform_3(%arg0: i32, %arg1: memref<1xi32, #tpu.memory_space<smem>>) -> (i32, i32) {
    %c0_i32 = arith.constant 0 : i32
    %c0_i32_0 = arith.constant 0 : i32
    %c0_i32_1 = arith.constant 0 : i32
    return %c0_i32, %c0_i32_0 : i32, i32
  }
  func.func @transform_4(%arg0: i32, %arg1: memref<1xi32, #tpu.memory_space<smem>>) -> (i32, i32) {
    %c0_i32 = arith.constant 0 : i32
    %c0_i32_0 = arith.constant 0 : i32
    %c0_i32_1 = arith.constant 0 : i32
    return %c0_i32, %c0_i32_0 : i32, i32
  }
  func.func @transform_5(%arg0: i32, %arg1: memref<1xi32, #tpu.memory_space<smem>>) -> (i32, i32, i32) {
    %c0 = arith.constant 0 : index
    %0 = memref.load %arg1[%c0] : memref<1xi32, #tpu.memory_space<smem>>
    %c0_i32 = arith.constant 0 : i32
    %c0_i32_0 = arith.constant 0 : i32
    %c0_i32_1 = arith.constant 0 : i32
    return %0, %c0_i32, %c0_i32_0 : i32, i32, i32
  }
  func.func @transform_6(%arg0: i32, %arg1: memref<1xi32, #tpu.memory_space<smem>>) -> (i32, i32, i32) {
    %c0 = arith.constant 0 : index
    %0 = memref.load %arg1[%c0] : memref<1xi32, #tpu.memory_space<smem>>
    %c0_i32 = arith.constant 0 : i32
    %c0_i32_0 = arith.constant 0 : i32
    %c0_i32_1 = arith.constant 0 : i32
    return %0, %c0_i32, %c0_i32_0 : i32, i32, i32
  }
  func.func @transform_7(%arg0: i32, %arg1: memref<1xi32, #tpu.memory_space<smem>>) -> (i32, i32) {
    %c0_i32 = arith.constant 0 : i32
    %c0_i32_0 = arith.constant 0 : i32
    return %arg0, %c0_i32 : i32, i32
  }
}

</mosaic_0001>

<llo_original>
// kernel: tpu_custom_call.1
$region0: #{tpu_custom_call.1}
  #allocation0 [shape = 'u32[]', space=smem, size = 0x4, offset = 0x4, fixed_abs, tag = 'smem constant byte address 0x4 - core index']
  #allocation1 [shape = 'u32[144,128]{1,0:T(1,128)}', space=vmem, size = 0x12000, scoped, tag = 'internal scratch']
  #allocation2 [shape = 's32[1]{0}', space=sflag, size = 0x4, scoped, tag = 'scoped memory for tpu_custom_call.1']
  #allocation3 [shape = 's32[1]{0:T(128)S(6)}', space=smem, size = 0x200, scoped, tag = 'prefetched SMEM operand 0']
  %s0 = inlined_call_operand.<no memory space> [shape: s32[1], index: 0, kind: input, shape index: {}]
  %s1 = inlined_call_operand.hbm [shape: bf16[16,128], index: 1, kind: input, shape index: {}]
  %s2 = inlined_call_operand.hbm [shape: bf16[128,128], index: 2, kind: input, shape index: {}]
  %s3 = inlined_call_operand.vmem [shape: f32[1,128], index: 3, kind: input, shape index: {}]
  %s4 = inlined_call_operand.hbm [shape: bf16[128,128], index: 4, kind: input, shape index: {}]
  %s5 = inlined_call_operand.vmem [shape: f32[1,128], index: 5, kind: input, shape index: {}]
  %s6 = inlined_call_operand.hbm [shape: bf16[3,128,128], index: 6, kind: input, shape index: {}]
  %s7 = inlined_call_operand.vmem [shape: f32[3,1,128], index: 7, kind: input, shape index: {}]
  %s8 = inlined_call_operand.hbm [shape: f32[16,128], index: 8, kind: output, shape index: {}]
  %s9 = sld [smem:[#allocation0]]
  $region54: #{tpu_custom_call.1} parent=0
    _
  %s11 = ssub.s32 1, %s9
  %s12 = scalar_select 0, %s11, %s9
  %13 = sst [smem:[#allocation3]] %s0
  $region1: #{tpu_custom_call.1} parent=0
    #allocation4 [shape = 'u8[4096]{0}', space=vmem, size = 0x1000, scoped, tag = 'input window, operand 1, single buffered']
    #allocation5 [shape = 's32[1]{0}', space=sflag, size = 0x4, scoped, tag = 'scoped memory for tpu_custom_call.1']
    #allocation6 [shape = 's32[1]{0}', space=sflag, size = 0x4, scoped, tag = 'scoped memory for tpu_custom_call.1']
    #allocation7 [shape = 'u8[32768]{0}', space=vmem, size = 0x8000, scoped, tag = 'input window, operand 2, single buffered']
    #allocation8 [shape = 's32[1]{0}', space=sflag, size = 0x4, scoped, tag = 'scoped memory for tpu_custom_call.1']
    #allocation9 [shape = 'u8[32768]{0}', space=vmem, size = 0x8000, scoped, tag = 'input window, operand 4, single buffered']
    #allocation10 [shape = 'u8[32768]{0}', space=vmem, size = 0x8000, scoped, tag = 'input window, operand 6, single buffered']
    #allocation11 [shape = 's32[1]{0}', space=sflag, size = 0x4, scoped, tag = 'scoped memory for tpu_custom_call.1']
    #allocation12 [shape = 'u8[8192]{0}', space=vmem, size = 0x2000, scoped, tag = 'output window, operand 0, single buffered']
    %14 = vsyncpa [#allocation5], 0
    %15 = vsyncpa [#allocation8], 0
    %16 = vsyncpa [#allocation11], 0
    %17 = vsyncpa [#allocation6], 0
    // Predicated region
    $region2: #{tpu_custom_call.1} parent=1 // pred_check
      _
    $region3: #{tpu_custom_call.1} parent=1 // pred_check_branch
      %19 = sbr.rel (0) target = $region5
    $region4: #{tpu_custom_call.1} parent=1 // pred_region
      %s21 = ssub.s32 128, 128
      %22 = vsyncadd [#allocation5], %s21
      %s23 = sshll.u32 [#allocation4], 4
      %s24 = int_to_ptr.vmem [resolvable:$true] %s23
      %29 = dma.hbm_to_vmem [thread:$0]  %s1, 128, %s24, [#allocation5], 64, 64, 4
    $region5: #{tpu_custom_call.1} parent=1 // pred_fallthru
      _
    // Predicated region
    $region6: #{tpu_custom_call.1} parent=1 // pred_check
      _
    $region7: #{tpu_custom_call.1} parent=1 // pred_check_branch
      %31 = sbr.rel (0) target = $region9
    $region8: #{tpu_custom_call.1} parent=1 // pred_region
      %s33 = ssub.s32 1024, 1024
      %34 = vsyncadd [#allocation8], %s33
      %s35 = sshll.u32 [#allocation7], 4
      %s36 = int_to_ptr.vmem [resolvable:$true] %s35
      %41 = dma.hbm_to_vmem [thread:$0]  %s2, 1024, %s36, [#allocation8], 64, 64, 4
    $region9: #{tpu_custom_call.1} parent=1 // pred_fallthru
      _
    // Predicated region
    $region10: #{tpu_custom_call.1} parent=1 // pred_check
      _
    $region11: #{tpu_custom_call.1} parent=1 // pred_check_branch
      %43 = sbr.rel (0) target = $region13
    $region12: #{tpu_custom_call.1} parent=1 // pred_region
      _
    $region13: #{tpu_custom_call.1} parent=1 // pred_fallthru
      _
    // Predicated region
    $region14: #{tpu_custom_call.1} parent=1 // pred_check
      _
    $region15: #{tpu_custom_call.1} parent=1 // pred_check_branch
      %45 = sbr.rel (0) target = $region17
    $region16: #{tpu_custom_call.1} parent=1 // pred_region
      %s47 = ssub.s32 1024, 1024
      %48 = vsyncadd [#allocation8], %s47
      %s49 = sshll.u32 [#allocation9], 4
      %s50 = int_to_ptr.vmem [resolvable:$true] %s49
      %55 = dma.hbm_to_vmem [thread:$0]  %s4, 1024, %s50, [#allocation8], 64, 64, 4
    $region17: #{tpu_custom_call.1} parent=1 // pred_fallthru
      _
    // Predicated region
    $region18: #{tpu_custom_call.1} parent=1 // pred_check
      _
    $region19: #{tpu_custom_call.1} parent=1 // pred_check_branch
      %57 = sbr.rel (0) target = $region21
    $region20: #{tpu_custom_call.1} parent=1 // pred_region
      _
    $region21: #{tpu_custom_call.1} parent=1 // pred_fallthru
      _
    // Predicated region
    $region22: #{tpu_custom_call.1} parent=1 // pred_check
      _
    $region23: #{tpu_custom_call.1} parent=1 // pred_check_branch
      %59 = sbr.rel (0) target = $region25
    $region24: #{tpu_custom_call.1} parent=1 // pred_region
      %s60 = sld [smem:[#allocation3]]
      %s62 = ssub.s32 1024, 1024
      %63 = vsyncadd [#allocation11], %s62
      %s64 = smul.addr %s60, 16
      %s65 = smul.addr %s64, 64
      %s66 = scalar_lea.hbm %s6, %s65
      %s67 = sshll.u32 [#allocation10], 4
      %s68 = int_to_ptr.vmem [resolvable:$true] %s67
      %73 = dma.hbm_to_vmem [thread:$0]  %s66, 1024, %s68, [#allocation11], 64, 64, 4
    $region25: #{tpu_custom_call.1} parent=1 // pred_fallthru
      _
    // Predicated region
    $region26: #{tpu_custom_call.1} parent=1 // pred_check
      _
    $region27: #{tpu_custom_call.1} parent=1 // pred_check_branch
      %75 = sbr.rel (0) target = $region29
    $region28: #{tpu_custom_call.1} parent=1 // pred_region
      %s76 = sld [smem:[#allocation3]]
      %p77 = scmp.lt.s32.totalorder %s76, 2
      %s78 = scalar_select %p77, %s76, 2
      %s79 = scalar_lea.vmem %s7, %s78
      %s80 = sld [smem:[#allocation3]]
    $region29: #{tpu_custom_call.1} parent=1 // pred_fallthru
      _
    // Predicated region
    $region30: #{tpu_custom_call.1} parent=1 // pred_check
      _
    $region31: #{tpu_custom_call.1} parent=1 // pred_check_branch
      %82 = sbr.rel (0) target = $region33
    $region32: #{tpu_custom_call.1} parent=1 // pred_region
      %83 = dma.done [#allocation5], 128
    $region33: #{tpu_custom_call.1} parent=1 // pred_fallthru
      _
    // Predicated region
    $region34: #{tpu_custom_call.1} parent=1 // pred_check
      _
    $region35: #{tpu_custom_call.1} parent=1 // pred_check_branch
      %85 = sbr.rel (0) target = $region37
    $region36: #{tpu_custom_call.1} parent=1 // pred_region
      %86 = dma.done [#allocation8], 1024
    $region37: #{tpu_custom_call.1} parent=1 // pred_fallthru
      _
    // Predicated region
    $region38: #{tpu_custom_call.1} parent=1 // pred_check
      _
    $region39: #{tpu_custom_call.1} parent=1 // pred_check_branch
      %88 = sbr.rel (0) target = $region41
    $region40: #{tpu_custom_call.1} parent=1 // pred_region
      %89 = dma.done [#allocation8], 1024
    $region41: #{tpu_custom_call.1} parent=1 // pred_fallthru
      _
    // Predicated region
    $region42: #{tpu_custom_call.1} parent=1 // pred_check
      _
    $region43: #{tpu_custom_call.1} parent=1 // pred_check_branch
      %91 = sbr.rel (0) target = $region45
    $region44: #{tpu_custom_call.1} parent=1 // pred_region
      %92 = dma.done [#allocation11], 1024
    $region45: #{tpu_custom_call.1} parent=1 // pred_fallthru
      _
    %s93 = sld [smem:[#allocation3]]
    %p94 = scmp.lt.s32.totalorder %s93, 2
    %s95 = scalar_select %p94, %s93, 2
    %s96 = scalar_lea.vmem %s7, %s95
    %s97 = sld [smem:[#allocation3]]
    %s98 = sld [smem:[#allocation3]]
    %p99 = scmp.lt.s32.totalorder %s98, 2
    %s100 = scalar_select %p99, %s98, 2
    %s101 = scalar_lea.vmem %s7, %s100
    %s102 = sld [smem:[#allocation3]]
    %v104 = vld [vmem:[#allocation4] sm:$0xf]
    %v105 = vld [vmem:[#allocation4 + $0x4] sm:$0xf]
    %v106 = vld [vmem:[#allocation7] sm:$0xf]
    %v107 = vld [vmem:[#allocation7 + $0x4] sm:$0xf]
    %v108 = vld [vmem:[#allocation7 + $0x8] sm:$0xf]
    %v109 = vld [vmem:[#allocation7 + $0xc] sm:$0xf]
    %v110 = vld [vmem:[#allocation7 + $0x10] sm:$0xf]
    %v111 = vld [vmem:[#allocation7 + $0x14] sm:$0xf]
    %v112 = vld [vmem:[#allocation7 + $0x18] sm:$0xf]
    %v113 = vld [vmem:[#allocation7 + $0x1c] sm:$0xf]
    %v114 = vld [vmem:[#allocation7 + $0x20] sm:$0xf]
    %v115 = vld [vmem:[#allocation7 + $0x24] sm:$0xf]
    %v116 = vld [vmem:[#allocation7 + $0x28] sm:$0xf]
    %v117 = vld [vmem:[#allocation7 + $0x2c] sm:$0xf]
    %v118 = vld [vmem:[#allocation7 + $0x30] sm:$0xf]
    %v119 = vld [vmem:[#allocation7 + $0x34] sm:$0xf]
    %v120 = vld [vmem:[#allocation7 + $0x38] sm:$0xf]
    %v121 = vld [vmem:[#allocation7 + $0x3c] sm:$0xf]
    %v122 = vld [vmem:[%s3] sm:$0x1]
    %v124 = vlaneseq
    %v125 = vshrl.u32 %v124, 7
    %v126 = vsub.s32 0, %v125
    %v127 = vrot.slane %v122, %v126
    %v131 = vunpack.c.l.b16 %v104
    %v132 = vunpack.c.l.b16 %v105
    %v133 = vpack.c.b16 %v132, %v131
    %v151 = vunpack.c.l.b16 %v106
    %v152 = vunpack.c.l.b16 %v107
    %v153 = vunpack.c.l.b16 %v108
    %v154 = vunpack.c.l.b16 %v109
    %v155 = vunpack.c.l.b16 %v110
    %v156 = vunpack.c.l.b16 %v111
    %v157 = vunpack.c.l.b16 %v112
    %v158 = vunpack.c.l.b16 %v113
    %v159 = vunpack.c.l.b16 %v114
    %v160 = vunpack.c.l.b16 %v115
    %v161 = vunpack.c.l.b16 %v116
    %v162 = vunpack.c.l.b16 %v117
    %v163 = vunpack.c.l.b16 %v118
    %v164 = vunpack.c.l.b16 %v119
    %v165 = vunpack.c.l.b16 %v120
    %v166 = vunpack.c.l.b16 %v121
    %v167 = vpack.c.b16 %v152, %v151
    %v168 = vpack.c.b16 %v154, %v153
    %v169 = vpack.c.b16 %v156, %v155
    %v170 = vpack.c.b16 %v158, %v157
    %v171 = vpack.c.b16 %v160, %v159
    %v172 = vpack.c.b16 %v162, %v161
    %v173 = vpack.c.b16 %v164, %v163
    %v174 = vpack.c.b16 %v166, %v165
    %183 = vmatprep.subr.bf16.mxu0 0
    %184 = vmatpush1.bf16.msra.mxu0 %v167
    %185 = vmatprep.subr.bf16.mxu0 0
    %186 = vmatpush1.bf16.msra.mxu0 %v168
    %187 = vmatprep.subr.bf16.mxu0 0
    %188 = vmatpush1.bf16.msra.mxu0 %v169
    %189 = vmatprep.subr.bf16.mxu0 0
    %190 = vmatpush1.bf16.msra.mxu0 %v170
    %191 = vmatprep.subr.bf16.mxu0 0
    %192 = vmatpush1.bf16.msra.mxu0 %v171
    %193 = vmatprep.subr.bf16.mxu0 0
    %194 = vmatpush1.bf16.msra.mxu0 %v172
    %195 = vmatprep.subr.bf16.mxu0 0
    %196 = vmatpush1.bf16.msra.mxu0 %v173
    %197 = vmatprep.subr.bf16.mxu0 0
    %198 = vmatpush1.bf16.msra.mxu0 %v174
    %199 = vmatprep.subr.bf16.mxu0 0
    %200 = vmatpush1.bf16.msra.mxu0 0
    %201 = vmatprep.subr.bf16.mxu0 0
    %202 = vmatpush1.bf16.msra.mxu0 0
    %203 = vmatprep.subr.bf16.mxu0 0
    %204 = vmatpush1.bf16.msra.mxu0 0
    %205 = vmatprep.subr.bf16.mxu0 0
    %206 = vmatpush1.bf16.msra.mxu0 0
    %207 = vmatprep.subr.bf16.mxu0 0
    %208 = vmatpush1.bf16.msra.mxu0 0
    %209 = vmatprep.subr.bf16.mxu0 0
    %210 = vmatpush1.bf16.msra.mxu0 0
    %211 = vmatprep.subr.bf16.mxu0 0
    %212 = vmatpush1.bf16.msra.mxu0 0
    %213 = vmatprep.subr.bf16.mxu0 0
    %214 = vmatpush1.bf16.msra.mxu0 0
    %215 = vmatprep.mubr.bf16.mxu0 0
    %216 = vmatmul.mubr.bf16.gmra.mrb[0].mxu0 %v133
    %v217 = vpop.f32.mrb[0].mxu0
    %v218 = vadd.f32 %v127, %v217
    %v219 = vpop.f32.mrb[0].mxu0
    %v220 = vpop.f32.mrb[0].mxu0
    %v221 = vadd.f32 %v127, %v220
    %v222 = vpop.f32.mrb[0].mxu0
    %223 = vdwg.mxu0
    %v224 = vmax.f32 %v218, 0.0
    %v225 = vmax.f32 %v221, 0.0
    %v226 = vpack.c.bf16 %v225, %v224
    %v227 = vld [vmem:[#allocation9] sm:$0xf]
    %v228 = vld [vmem:[#allocation9 + $0x4] sm:$0xf]
    %v229 = vld [vmem:[#allocation9 + $0x8] sm:$0xf]
    %v230 = vld [vmem:[#allocation9 + $0xc] sm:$0xf]
    %v231 = vld [vmem:[#allocation9 + $0x10] sm:$0xf]
    %v232 = vld [vmem:[#allocation9 + $0x14] sm:$0xf]
    %v233 = vld [vmem:[#allocation9 + $0x18] sm:$0xf]
    %v234 = vld [vmem:[#allocation9 + $0x1c] sm:$0xf]
    %v235 = vld [vmem:[#allocation9 + $0x20] sm:$0xf]
    %v236 = vld [vmem:[#allocation9 + $0x24] sm:$0xf]
    %v237 = vld [vmem:[#allocation9 + $0x28] sm:$0xf]
    %v238 = vld [vmem:[#allocation9 + $0x2c] sm:$0xf]
    %v239 = vld [vmem:[#allocation9 + $0x30] sm:$0xf]
    %v240 = vld [vmem:[#allocation9 + $0x34] sm:$0xf]
    %v241 = vld [vmem:[#allocation9 + $0x38] sm:$0xf]
    %v242 = vld [vmem:[#allocation9 + $0x3c] sm:$0xf]
    %v243 = vld [vmem:[%s5] sm:$0x1]
    %v245 = vlaneseq
    %v246 = vshrl.u32 %v245, 7
    %v247 = vsub.s32 0, %v246
    %v248 = vrot.slane %v243, %v247
    %v266 = vunpack.c.l.b16 %v227
    %v267 = vunpack.c.l.b16 %v228
    %v268 = vunpack.c.l.b16 %v229
    %v269 = vunpack.c.l.b16 %v230
    %v270 = vunpack.c.l.b16 %v231
    %v271 = vunpack.c.l.b16 %v232
    %v272 = vunpack.c.l.b16 %v233
    %v273 = vunpack.c.l.b16 %v234
    %v274 = vunpack.c.l.b16 %v235
    %v275 = vunpack.c.l.b16 %v236
    %v276 = vunpack.c.l.b16 %v237
    %v277 = vunpack.c.l.b16 %v238
    %v278 = vunpack.c.l.b16 %v239
    %v279 = vunpack.c.l.b16 %v240
    %v280 = vunpack.c.l.b16 %v241
    %v281 = vunpack.c.l.b16 %v242
    %v282 = vpack.c.b16 %v267, %v266
    %v283 = vpack.c.b16 %v269, %v268
    %v284 = vpack.c.b16 %v271, %v270
    %v285 = vpack.c.b16 %v273, %v272
    %v286 = vpack.c.b16 %v275, %v274
    %v287 = vpack.c.b16 %v277, %v276
    %v288 = vpack.c.b16 %v279, %v278
    %v289 = vpack.c.b16 %v281, %v280
    %298 = vmatprep.subr.bf16.mxu0 0
    %299 = vmatpush1.bf16.msra.mxu0 %v282
    %300 = vmatprep.subr.bf16.mxu0 0
    %301 = vmatpush1.bf16.msra.mxu0 %v283
    %302 = vmatprep.subr.bf16.mxu0 0
    %303 = vmatpush1.bf16.msra.mxu0 %v284
    %304 = vmatprep.subr.bf16.mxu0 0
    %305 = vmatpush1.bf16.msra.mxu0 %v285
    %306 = vmatprep.subr.bf16.mxu0 0
    %307 = vmatpush1.bf16.msra.mxu0 %v286
    %308 = vmatprep.subr.bf16.mxu0 0
    %309 = vmatpush1.bf16.msra.mxu0 %v287
    %310 = vmatprep.subr.bf16.mxu0 0
    %311 = vmatpush1.bf16.msra.mxu0 %v288
    %312 = vmatprep.subr.bf16.mxu0 0
    %313 = vmatpush1.bf16.msra.mxu0 %v289
    %314 = vmatprep.subr.bf16.mxu0 0
    %315 = vmatpush1.bf16.msra.mxu0 0
    %316 = vmatprep.subr.bf16.mxu0 0
    %317 = vmatpush1.bf16.msra.mxu0 0
    %318 = vmatprep.subr.bf16.mxu0 0
    %319 = vmatpush1.bf16.msra.mxu0 0
    %320 = vmatprep.subr.bf16.mxu0 0
    %321 = vmatpush1.bf16.msra.mxu0 0
    %322 = vmatprep.subr.bf16.mxu0 0
    %323 = vmatpush1.bf16.msra.mxu0 0
    %324 = vmatprep.subr.bf16.mxu0 0
    %325 = vmatpush1.bf16.msra.mxu0 0
    %326 = vmatprep.subr.bf16.mxu0 0
    %327 = vmatpush1.bf16.msra.mxu0 0
    %328 = vmatprep.subr.bf16.mxu0 0
    %329 = vmatpush1.bf16.msra.mxu0 0
    %330 = vmatprep.mubr.bf16.mxu0 0
    %331 = vmatmul.mubr.bf16.gmra.mrb[0].mxu0 %v226
    %v332 = vpop.f32.mrb[0].mxu0
    %v333 = vadd.f32 %v248, %v332
    %v334 = vpop.f32.mrb[0].mxu0
    %v335 = vpop.f32.mrb[0].mxu0
    %v336 = vadd.f32 %v248, %v335
    %v337 = vpop.f32.mrb[0].mxu0
    %338 = vdwg.mxu0
    %v339 = vmax.f32 %v333, 0.0
    %v340 = vmax.f32 %v336, 0.0
    %v341 = vpack.c.bf16 %v340, %v339
    %v342 = vld [vmem:[#allocation10] sm:$0xf]
    %v343 = vld [vmem:[#allocation10 + $0x4] sm:$0xf]
    %v344 = vld [vmem:[#allocation10 + $0x8] sm:$0xf]
    %v345 = vld [vmem:[#allocation10 + $0xc] sm:$0xf]
    %v346 = vld [vmem:[#allocation10 + $0x10] sm:$0xf]
    %v347 = vld [vmem:[#allocation10 + $0x14] sm:$0xf]
    %v348 = vld [vmem:[#allocation10 + $0x18] sm:$0xf]
    %v349 = vld [vmem:[#allocation10 + $0x1c] sm:$0xf]
    %v350 = vld [vmem:[#allocation10 + $0x20] sm:$0xf]
    %v351 = vld [vmem:[#allocation10 + $0x24] sm:$0xf]
    %v352 = vld [vmem:[#allocation10 + $0x28] sm:$0xf]
    %v353 = vld [vmem:[#allocation10 + $0x2c] sm:$0xf]
    %v354 = vld [vmem:[#allocation10 + $0x30] sm:$0xf]
    %v355 = vld [vmem:[#allocation10 + $0x34] sm:$0xf]
    %v356 = vld [vmem:[#allocation10 + $0x38] sm:$0xf]
    %v357 = vld [vmem:[#allocation10 + $0x3c] sm:$0xf]
    %v358 = vld [vmem:[%s101] sm:$0x1]
    %v360 = vlaneseq
    %v361 = vshrl.u32 %v360, 7
    %v362 = vsub.s32 0, %v361
    %v363 = vrot.slane %v358, %v362
    %v381 = vunpack.c.l.b16 %v342
    %v382 = vunpack.c.l.b16 %v343
    %v383 = vunpack.c.l.b16 %v344
    %v384 = vunpack.c.l.b16 %v345
    %v385 = vunpack.c.l.b16 %v346
    %v386 = vunpack.c.l.b16 %v347
    %v387 = vunpack.c.l.b16 %v348
    %v388 = vunpack.c.l.b16 %v349
    %v389 = vunpack.c.l.b16 %v350
    %v390 = vunpack.c.l.b16 %v351
    %v391 = vunpack.c.l.b16 %v352
    %v392 = vunpack.c.l.b16 %v353
    %v393 = vunpack.c.l.b16 %v354
    %v394 = vunpack.c.l.b16 %v355
    %v395 = vunpack.c.l.b16 %v356
    %v396 = vunpack.c.l.b16 %v357
    %v397 = vpack.c.b16 %v382, %v381
    %v398 = vpack.c.b16 %v384, %v383
    %v399 = vpack.c.b16 %v386, %v385
    %v400 = vpack.c.b16 %v388, %v387
    %v401 = vpack.c.b16 %v390, %v389
    %v402 = vpack.c.b16 %v392, %v391
    %v403 = vpack.c.b16 %v394, %v393
    %v404 = vpack.c.b16 %v396, %v395
    %413 = vmatprep.subr.bf16.mxu0 0
    %414 = vmatpush1.bf16.msra.mxu0 %v397
    %415 = vmatprep.subr.bf16.mxu0 0
    %416 = vmatpush1.bf16.msra.mxu0 %v398
    %417 = vmatprep.subr.bf16.mxu0 0
    %418 = vmatpush1.bf16.msra.mxu0 %v399
    %419 = vmatprep.subr.bf16.mxu0 0
    %420 = vmatpush1.bf16.msra.mxu0 %v400
    %421 = vmatprep.subr.bf16.mxu0 0
    %422 = vmatpush1.bf16.msra.mxu0 %v401
    %423 = vmatprep.subr.bf16.mxu0 0
    %424 = vmatpush1.bf16.msra.mxu0 %v402
    %425 = vmatprep.subr.bf16.mxu0 0
    %426 = vmatpush1.bf16.msra.mxu0 %v403
    %427 = vmatprep.subr.bf16.mxu0 0
    %428 = vmatpush1.bf16.msra.mxu0 %v404
    %429 = vmatprep.subr.bf16.mxu0 0
    %430 = vmatpush1.bf16.msra.mxu0 0
    %431 = vmatprep.subr.bf16.mxu0 0
    %432 = vmatpush1.bf16.msra.mxu0 0
    %433 = vmatprep.subr.bf16.mxu0 0
    %434 = vmatpush1.bf16.msra.mxu0 0
    %435 = vmatprep.subr.bf16.mxu0 0
    %436 = vmatpush1.bf16.msra.mxu0 0
    %437 = vmatprep.subr.bf16.mxu0 0
    %438 = vmatpush1.bf16.msra.mxu0 0
    %439 = vmatprep.subr.bf16.mxu0 0
    %440 = vmatpush1.bf16.msra.mxu0 0
    %441 = vmatprep.subr.bf16.mxu0 0
    %442 = vmatpush1.bf16.msra.mxu0 0
    %443 = vmatprep.subr.bf16.mxu0 0
    %444 = vmatpush1.bf16.msra.mxu0 0
    %445 = vmatprep.mubr.bf16.mxu0 0
    %446 = vmatmul.mubr.bf16.gmra.mrb[0].mxu0 %v341
    %v447 = vpop.f32.mrb[0].mxu0
    %v448 = vadd.f32 %v363, %v447
    %v449 = vpop.f32.mrb[0].mxu0
    %v450 = vpop.f32.mrb[0].mxu0
    %v451 = vadd.f32 %v363, %v450
    %v452 = vpop.f32.mrb[0].mxu0
    %453 = vdwg.mxu0
    %454 = vst [vmem:[#allocation12] sm:$0xff] %v448
    %455 = vst [vmem:[#allocation12 + $0x8] sm:$0xff] %v451
    // Predicated region
    $region46: #{tpu_custom_call.1} parent=1 // pred_check
      _
    $region47: #{tpu_custom_call.1} parent=1 // pred_check_branch
      %457 = sbr.rel (0) target = $region49
    $region48: #{tpu_custom_call.1} parent=1 // pred_region
      %s459 = ssub.s32 256, 256
      %460 = vsyncadd [#allocation6], %s459
      %s461 = sshll.u32 [#allocation12], 4
      %s462 = int_to_ptr.vmem [resolvable:$true] %s461
      %467 = dma.vmem_to_hbm [thread:$0]  %s462, 256, %s8, [#allocation6], 128, 128, 8
    $region49: #{tpu_custom_call.1} parent=1 // pred_fallthru
      _
    // Predicated region
    $region50: #{tpu_custom_call.1} parent=1 // pred_check
      _
    $region51: #{tpu_custom_call.1} parent=1 // pred_check_branch
      %469 = sbr.rel (0) target = $region53
    $region52: #{tpu_custom_call.1} parent=1 // pred_region
      %470 = dma.done [#allocation6], 256
    $region53: #{tpu_custom_call.1} parent=1 // pred_fallthru
      _
    %471 = vsyncpa [#allocation5], 1
    %472 = vsyncpa [#allocation8], 1
    %473 = vsyncpa [#allocation11], 1
    %474 = vsyncpa [#allocation6], 1

// kernel: tpu_custom_call.1
$region0: #{tpu_custom_call.1}
  #allocation0 [shape = 'u32[]', space=smem, size = 0x4, offset = 0x4, fixed_abs, tag = 'smem constant byte address 0x4 - core index']
  #allocation1 [shape = 'u32[144,128]{1,0:T(1,128)}', space=vmem, size = 0x12000, scoped, tag = 'internal scratch']
  #allocation2 [shape = 's32[1]{0}', space=sflag, size = 0x4, scoped, tag = 'scoped memory for tpu_custom_call.1']
  #allocation3 [shape = 's32[1]{0:T(128)S(6)}', space=smem, size = 0x200, scoped, tag = 'prefetched SMEM operand 0']
  %s0 = inlined_call_operand.<no memory space> [shape: s32[1], index: 0, kind: input, shape index: {}]
  %s1 = inlined_call_operand.hbm [shape: bf16[16,128], index: 1, kind: input, shape index: {}]
  %s2 = inlined_call_operand.hbm [shape: bf16[128,128], index: 2, kind: input, shape index: {}]
  %s3 = inlined_call_operand.vmem [shape: f32[1,128], index: 3, kind: input, shape index: {}]
  %s4 = inlined_call_operand.hbm [shape: bf16[128,128], index: 4, kind: input, shape index: {}]
  %s5 = inlined_call_operand.vmem [shape: f32[1,128], index: 5, kind: input, shape index: {}]
  %s6 = inlined_call_operand.hbm [shape: bf16[3,128,128], index: 6, kind: input, shape index: {}]
  %s7 = inlined_call_operand.vmem [shape: f32[3,1,128], index: 7, kind: input, shape index: {}]
  %s8 = inlined_call_operand.hbm [shape: f32[16,128], index: 8, kind: output, shape index: {}]
  %s9 = sld [smem:[#allocation0]]
  $region54: #{tpu_custom_call.1} parent=0
    _
  %s11 = ssub.s32 1, %s9
  %s12 = scalar_select 0, %s11, %s9
  %13 = sst [smem:[#allocation3]] %s0
  $region1: #{tpu_custom_call.1} parent=0
    #allocation4 [shape = 'u8[4096]{0}', space=vmem, size = 0x1000, scoped, tag = 'input window, operand 1, single buffered']
    #allocation5 [shape = 's32[1]{0}', space=sflag, size = 0x4, scoped, tag = 'scoped memory for tpu_custom_call.1']
    #allocation6 [shape = 's32[1]{0}', space=sflag, size = 0x4, scoped, tag = 'scoped memory for tpu_custom_call.1']
    #allocation7 [shape = 'u8[32768]{0}', space=vmem, size = 0x8000, scoped, tag = 'input window, operand 2, single buffered']
    #allocation8 [shape = 's32[1]{0}', space=sflag, size = 0x4, scoped, tag = 'scoped memory for tpu_custom_call.1']
    #allocation9 [shape = 'u8[32768]{0}', space=vmem, size = 0x8000, scoped, tag = 'input window, operand 4, single buffered']
    #allocation10 [shape = 'u8[32768]{0}', space=vmem, size = 0x8000, scoped, tag = 'input window, operand 6, single buffered']
    #allocation11 [shape = 's32[1]{0}', space=sflag, size = 0x4, scoped, tag = 'scoped memory for tpu_custom_call.1']
    #allocation12 [shape = 'u8[8192]{0}', space=vmem, size = 0x2000, scoped, tag = 'output window, operand 0, single buffered']
    %14 = vsyncpa [#allocation5], 0
    %15 = vsyncpa [#allocation8], 0
    %16 = vsyncpa [#allocation11], 0
    %17 = vsyncpa [#allocation6], 0
    // Predicated region
    $region2: #{tpu_custom_call.1} parent=1 // pred_check
      _
    $region3: #{tpu_custom_call.1} parent=1 // pred_check_branch
      %19 = sbr.rel (0) target = $region5
    $region4: #{tpu_custom_call.1} parent=1 // pred_region
      %s21 = ssub.s32 128, 128
      %22 = vsyncadd [#allocation5], %s21
      %s23 = sshll.u32 [#allocation4], 4
      %s24 = int_to_ptr.vmem [resolvable:$true] %s23
      %29 = dma.hbm_to_vmem [thread:$0]  %s1, 128, %s24, [#allocation5], 64, 64, 4
    $region5: #{tpu_custom_call.1} parent=1 // pred_fallthru
      _
    // Predicated region
    $region6: #{tpu_custom_call.1} parent=1 // pred_check
      _
    $region7: #{tpu_custom_call.1} parent=1 // pred_check_branch
      %31 = sbr.rel (0) target = $region9
    $region8: #{tpu_custom_call.1} parent=1 // pred_region
      %s33 = ssub.s32 1024, 1024
      %34 = vsyncadd [#allocation8], %s33
      %s35 = sshll.u32 [#allocation7], 4
      %s36 = int_to_ptr.vmem [resolvable:$true] %s35
      %41 = dma.hbm_to_vmem [thread:$0]  %s2, 1024, %s36, [#allocation8], 64, 64, 4
    $region9: #{tpu_custom_call.1} parent=1 // pred_fallthru
      _
    // Predicated region
    $region10: #{tpu_custom_call.1} parent=1 // pred_check
      _
    $region11: #{tpu_custom_call.1} parent=1 // pred_check_branch
      %43 = sbr.rel (0) target = $region13
    $region12: #{tpu_custom_call.1} parent=1 // pred_region
      _
    $region13: #{tpu_custom_call.1} parent=1 // pred_fallthru
      _
    // Predicated region
    $region14: #{tpu_custom_call.1} parent=1 // pred_check
      _
    $region15: #{tpu_custom_call.1} parent=1 // pred_check_branch
      %45 = sbr.rel (0) target = $region17
    $region16: #{tpu_custom_call.1} parent=1 // pred_region
      %s47 = ssub.s32 1024, 1024
      %48 = vsyncadd [#allocation8], %s47
      %s49 = sshll.u32 [#allocation9], 4
      %s50 = int_to_ptr.vmem [resolvable:$true] %s49
      %55 = dma.hbm_to_vmem [thread:$0]  %s4, 1024, %s50, [#allocation8], 64, 64, 4
    $region17: #{tpu_custom_call.1} parent=1 // pred_fallthru
      _
    // Predicated region
    $region18: #{tpu_custom_call.1} parent=1 // pred_check
      _
    $region19: #{tpu_custom_call.1} parent=1 // pred_check_branch
      %57 = sbr.rel (0) target = $region21
    $region20: #{tpu_custom_call.1} parent=1 // pred_region
      _
    $region21: #{tpu_custom_call.1} parent=1 // pred_fallthru
      _
    // Predicated region
    $region22: #{tpu_custom_call.1} parent=1 // pred_check
      _
    $region23: #{tpu_custom_call.1} parent=1 // pred_check_branch
      %59 = sbr.rel (0) target = $region25
    $region24: #{tpu_custom_call.1} parent=1 // pred_region
      %s60 = sld [smem:[#allocation3]]
      %s62 = ssub.s32 1024, 1024
      %63 = vsyncadd [#allocation11], %s62
      %s64 = smul.addr %s60, 16
      %s65 = smul.addr %s64, 64
      %s66 = scalar_lea.hbm %s6, %s65
      %s67 = sshll.u32 [#allocation10], 4
      %s68 = int_to_ptr.vmem [resolvable:$true] %s67
      %73 = dma.hbm_to_vmem [thread:$0]  %s66, 1024, %s68, [#allocation11], 64, 64, 4
    $region25: #{tpu_custom_call.1} parent=1 // pred_fallthru
      _
    // Predicated region
    $region26: #{tpu_custom_call.1} parent=1 // pred_check
      _
    $region27: #{tpu_custom_call.1} parent=1 // pred_check_branch
      %75 = sbr.rel (0) target = $region29
    $region28: #{tpu_custom_call.1} parent=1 // pred_region
      %s76 = sld [smem:[#allocation3]]
      %p77 = scmp.lt.s32.totalorder %s76, 2
      %s78 = scalar_select %p77, %s76, 2
      %s79 = scalar_lea.vmem %s7, %s78
      %s80 = sld [smem:[#allocation3]]
    $region29: #{tpu_custom_call.1} parent=1 // pred_fallthru
      _
    // Predicated region
    $region30: #{tpu_custom_call.1} parent=1 // pred_check
      _
    $region31: #{tpu_custom_call.1} parent=1 // pred_check_branch
      %82 = sbr.rel (0) target = $region33
    $region32: #{tpu_custom_call.1} parent=1 // pred_region
      %83 = dma.done [#allocation5], 128
    $region33: #{tpu_custom_call.1} parent=1 // pred_fallthru
      _
    // Predicated region
    $region34: #{tpu_custom_call.1} parent=1 // pred_check
      _
    $region35: #{tpu_custom_call.1} parent=1 // pred_check_branch
      %85 = sbr.rel (0) target = $region37
    $region36: #{tpu_custom_call.1} parent=1 // pred_region
      %86 = dma.done [#allocation8], 1024
    $region37: #{tpu_custom_call.1} parent=1 // pred_fallthru
      _
    // Predicated region
    $region38: #{tpu_custom_call.1} parent=1 // pred_check
      _
    $region39: #{tpu_custom_call.1} parent=1 // pred_check_branch
      %88 = sbr.rel (0) target = $region41
    $region40: #{tpu_custom_call.1} parent=1 // pred_region
      %89 = dma.done [#allocation8], 1024
    $region41: #{tpu_custom_call.1} parent=1 // pred_fallthru
      _
    // Predicated region
    $region42: #{tpu_custom_call.1} parent=1 // pred_check
      _
    $region43: #{tpu_custom_call.1} parent=1 // pred_check_branch
      %91 = sbr.rel (0) target = $region45
    $region44: #{tpu_custom_call.1} parent=1 // pred_region
      %92 = dma.done [#allocation11], 1024
    $region45: #{tpu_custom_call.1} parent=1 // pred_fallthru
      _
    %s93 = sld [smem:[#allocation3]]
    %p94 = scmp.lt.s32.totalorder %s93, 2
    %s95 = scalar_select %p94, %s93, 2
    %s96 = scalar_lea.vmem %s7, %s95
    %s97 = sld [smem:[#allocation3]]
    %s98 = sld [smem:[#allocation3]]
    %p99 = scmp.lt.s32.totalorder %s98, 2
    %s100 = scalar_select %p99, %s98, 2
    %s101 = scalar_lea.vmem %s7, %s100
    %s102 = sld [smem:[#allocation3]]
    %v104 = vld [vmem:[#allocation4] sm:$0xf]
    %v105 = vld [vmem:[#allocation4 + $0x4] sm:$0xf]
    %v106 = vld [vmem:[#allocation7] sm:$0xf]
    %v107 = vld [vmem:[#allocation7 + $0x4] sm:$0xf]
    %v108 = vld [vmem:[#allocation7 + $0x8] sm:$0xf]
    %v109 = vld [vmem:[#allocation7 + $0xc] sm:$0xf]
    %v110 = vld [vmem:[#allocation7 + $0x10] sm:$0xf]
    %v111 = vld [vmem:[#allocation7 + $0x14] sm:$0xf]
    %v112 = vld [vmem:[#allocation7 + $0x18] sm:$0xf]
    %v113 = vld [vmem:[#allocation7 + $0x1c] sm:$0xf]
    %v114 = vld [vmem:[#allocation7 + $0x20] sm:$0xf]
    %v115 = vld [vmem:[#allocation7 + $0x24] sm:$0xf]
    %v116 = vld [vmem:[#allocation7 + $0x28] sm:$0xf]
    %v117 = vld [vmem:[#allocation7 + $0x2c] sm:$0xf]
    %v118 = vld [vmem:[#allocation7 + $0x30] sm:$0xf]
    %v119 = vld [vmem:[#allocation7 + $0x34] sm:$0xf]
    %v120 = vld [vmem:[#allocation7 + $0x38] sm:$0xf]
    %v121 = vld [vmem:[#allocation7 + $0x3c] sm:$0xf]
    %v122 = vld [vmem:[%s3] sm:$0x1]
    %v124 = vlaneseq
    %v125 = vshrl.u32 %v124, 7
    %v126 = vsub.s32 0, %v125
    %v127 = vrot.slane %v122, %v126
    %v131 = vunpack.c.l.b16 %v104
    %v132 = vunpack.c.l.b16 %v105
    %v133 = vpack.c.b16 %v132, %v131
    %v151 = vunpack.c.l.b16 %v106
    %v152 = vunpack.c.l.b16 %v107
    %v153 = vunpack.c.l.b16 %v108
    %v154 = vunpack.c.l.b16 %v109
    %v155 = vunpack.c.l.b16 %v110
    %v156 = vunpack.c.l.b16 %v111
    %v157 = vunpack.c.l.b16 %v112
    %v158 = vunpack.c.l.b16 %v113
    %v159 = vunpack.c.l.b16 %v114
    %v160 = vunpack.c.l.b16 %v115
    %v161 = vunpack.c.l.b16 %v116
    %v162 = vunpack.c.l.b16 %v117
    %v163 = vunpack.c.l.b16 %v118
    %v164 = vunpack.c.l.b16 %v119
    %v165 = vunpack.c.l.b16 %v120
    %v166 = vunpack.c.l.b16 %v121
    %v167 = vpack.c.b16 %v152, %v151
    %v168 = vpack.c.b16 %v154, %v153
    %v169 = vpack.c.b16 %v156, %v155
    %v170 = vpack.c.b16 %v158, %v157
    %v171 = vpack.c.b16 %v160, %v159
    %v172 = vpack.c.b16 %v162, %v161
    %v173 = vpack.c.b16 %v164, %v163
    %v174 = vpack.c.b16 %v166, %v165
    %183 = vmatprep.subr.bf16.mxu0 0
    %184 = vmatpush1.bf16.msra.mxu0 %v167
    %185 = vmatprep.subr.bf16.mxu0 0
    %186 = vmatpush1.bf16.msra.mxu0 %v168
    %187 = vmatprep.subr.bf16.mxu0 0
    %188 = vmatpush1.bf16.msra.mxu0 %v169
    %189 = vmatprep.subr.bf16.mxu0 0
    %190 = vmatpush1.bf16.msra.mxu0 %v170
    %191 = vmatprep.subr.bf16.mxu0 0
    %192 = vmatpush1.bf16.msra.mxu0 %v171
    %193 = vmatprep.subr.bf16.mxu0 0
    %194 = vmatpush1.bf16.msra.mxu0 %v172
    %195 = vmatprep.subr.bf16.mxu0 0
    %196 = vmatpush1.bf16.msra.mxu0 %v173
    %197 = vmatprep.subr.bf16.mxu0 0
    %198 = vmatpush1.bf16.msra.mxu0 %v174
    %199 = vmatprep.subr.bf16.mxu0 0
    %200 = vmatpush1.bf16.msra.mxu0 0
    %201 = vmatprep.subr.bf16.mxu0 0
    %202 = vmatpush1.bf16.msra.mxu0 0
    %203 = vmatprep.subr.bf16.mxu0 0
    %204 = vmatpush1.bf16.msra.mxu0 0
    %205 = vmatprep.subr.bf16.mxu0 0
    %206 = vmatpush1.bf16.msra.mxu0 0
    %207 = vmatprep.subr.bf16.mxu0 0
    %208 = vmatpush1.bf16.msra.mxu0 0
    %209 = vmatprep.subr.bf16.mxu0 0
    %210 = vmatpush1.bf16.msra.mxu0 0
    %211 = vmatprep.subr.bf16.mxu0 0
    %212 = vmatpush1.bf16.msra.mxu0 0
    %213 = vmatprep.subr.bf16.mxu0 0
    %214 = vmatpush1.bf16.msra.mxu0 0
    %215 = vmatprep.mubr.bf16.mxu0 0
    %216 = vmatmul.mubr.bf16.gmra.mrb[0].mxu0 %v133
    %v217 = vpop.f32.mrb[0].mxu0
    %v218 = vadd.f32 %v127, %v217
    %v219 = vpop.f32.mrb[0].mxu0
    %v220 = vpop.f32.mrb[0].mxu0
    %v221 = vadd.f32 %v127, %v220
    %v222 = vpop.f32.mrb[0].mxu0
    %223 = vdwg.mxu0
    %v224 = vmax.f32 %v218, 0.0
    %v225 = vmax.f32 %v221, 0.0
    %v226 = vpack.c.bf16 %v225, %v224
    %v227 = vld [vmem:[#allocation9] sm:$0xf]
    %v228 = vld [vmem:[#allocation9 + $0x4] sm:$0xf]
    %v229 = vld [vmem:[#allocation9 + $0x8] sm:$0xf]
    %v230 = vld [vmem:[#allocation9 + $0xc] sm:$0xf]
    %v231 = vld [vmem:[#allocation9 + $0x10] sm:$0xf]
    %v232 = vld [vmem:[#allocation9 + $0x14] sm:$0xf]
    %v233 = vld [vmem:[#allocation9 + $0x18] sm:$0xf]
    %v234 = vld [vmem:[#allocation9 + $0x1c] sm:$0xf]
    %v235 = vld [vmem:[#allocation9 + $0x20] sm:$0xf]
    %v236 = vld [vmem:[#allocation9 + $0x24] sm:$0xf]
    %v237 = vld [vmem:[#allocation9 + $0x28] sm:$0xf]
    %v238 = vld [vmem:[#allocation9 + $0x2c] sm:$0xf]
    %v239 = vld [vmem:[#allocation9 + $0x30] sm:$0xf]
    %v240 = vld [vmem:[#allocation9 + $0x34] sm:$0xf]
    %v241 = vld [vmem:[#allocation9 + $0x38] sm:$0xf]
    %v242 = vld [vmem:[#allocation9 + $0x3c] sm:$0xf]
    %v243 = vld [vmem:[%s5] sm:$0x1]
    %v245 = vlaneseq
    %v246 = vshrl.u32 %v245, 7
    %v247 = vsub.s32 0, %v246
    %v248 = vrot.slane %v243, %v247
    %v266 = vunpack.c.l.b16 %v227
    %v267 = vunpack.c.l.b16 %v228
    %v268 = vunpack.c.l.b16 %v229
    %v269 = vunpack.c.l.b16 %v230
    %v270 = vunpack.c.l.b16 %v231
    %v271 = vunpack.c.l.b16 %v232
    %v272 = vunpack.c.l.b16 %v233
    %v273 = vunpack.c.l.b16 %v234
    %v274 = vunpack.c.l.b16 %v235
    %v275 = vunpack.c.l.b16 %v236
    %v276 = vunpack.c.l.b16 %v237
    %v277 = vunpack.c.l.b16 %v238
    %v278 = vunpack.c.l.b16 %v239
    %v279 = vunpack.c.l.b16 %v240
    %v280 = vunpack.c.l.b16 %v241
    %v281 = vunpack.c.l.b16 %v242
    %v282 = vpack.c.b16 %v267, %v266
    %v283 = vpack.c.b16 %v269, %v268
    %v284 = vpack.c.b16 %v271, %v270
    %v285 = vpack.c.b16 %v273, %v272
    %v286 = vpack.c.b16 %v275, %v274
    %v287 = vpack.c.b16 %v277, %v276
    %v288 = vpack.c.b16 %v279, %v278
    %v289 = vpack.c.b16 %v281, %v280
    %298 = vmatprep.subr.bf16.mxu0 0
    %299 = vmatpush1.bf16.msra.mxu0 %v282
    %300 = vmatprep.subr.bf16.mxu0 0
    %301 = vmatpush1.bf16.msra.mxu0 %v283
    %302 = vmatprep.subr.bf16.mxu0 0
    %303 = vmatpush1.bf16.msra.mxu0 %v284
    %304 = vmatprep.subr.bf16.mxu0 0
    %305 = vmatpush1.bf16.msra.mxu0 %v285
    %306 = vmatprep.subr.bf16.mxu0 0
    %307 = vmatpush1.bf16.msra.mxu0 %v286
    %308 = vmatprep.subr.bf16.mxu0 0
    %309 = vmatpush1.bf16.msra.mxu0 %v287
    %310 = vmatprep.subr.bf16.mxu0 0
    %311 = vmatpush1.bf16.msra.mxu0 %v288
    %312 = vmatprep.subr.bf16.mxu0 0
    %313 = vmatpush1.bf16.msra.mxu0 %v289
    %314 = vmatprep.subr.bf16.mxu0 0
    %315 = vmatpush1.bf16.msra.mxu0 0
    %316 = vmatprep.subr.bf16.mxu0 0
    %317 = vmatpush1.bf16.msra.mxu0 0
    %318 = vmatprep.subr.bf16.mxu0 0
    %319 = vmatpush1.bf16.msra.mxu0 0
    %320 = vmatprep.subr.bf16.mxu0 0
    %321 = vmatpush1.bf16.msra.mxu0 0
    %322 = vmatprep.subr.bf16.mxu0 0
    %323 = vmatpush1.bf16.msra.mxu0 0
    %324 = vmatprep.subr.bf16.mxu0 0
    %325 = vmatpush1.bf16.msra.mxu0 0
    %326 = vmatprep.subr.bf16.mxu0 0
    %327 = vmatpush1.bf16.msra.mxu0 0
    %328 = vmatprep.subr.bf16.mxu0 0
    %329 = vmatpush1.bf16.msra.mxu0 0
    %330 = vmatprep.mubr.bf16.mxu0 0
    %331 = vmatmul.mubr.bf16.gmra.mrb[0].mxu0 %v226
    %v332 = vpop.f32.mrb[0].mxu0
    %v333 = vadd.f32 %v248, %v332
    %v334 = vpop.f32.mrb[0].mxu0
    %v335 = vpop.f32.mrb[0].mxu0
    %v336 = vadd.f32 %v248, %v335
    %v337 = vpop.f32.mrb[0].mxu0
    %338 = vdwg.mxu0
    %v339 = vmax.f32 %v333, 0.0
    %v340 = vmax.f32 %v336, 0.0
    %v341 = vpack.c.bf16 %v340, %v339
    %v342 = vld [vmem:[#allocation10] sm:$0xf]
    %v343 = vld [vmem:[#allocation10 + $0x4] sm:$0xf]
    %v344 = vld [vmem:[#allocation10 + $0x8] sm:$0xf]
    %v345 = vld [vmem:[#allocation10 + $0xc] sm:$0xf]
    %v346 = vld [vmem:[#allocation10 + $0x10] sm:$0xf]
    %v347 = vld [vmem:[#allocation10 + $0x14] sm:$0xf]
    %v348 = vld [vmem:[#allocation10 + $0x18] sm:$0xf]
    %v349 = vld [vmem:[#allocation10 + $0x1c] sm:$0xf]
    %v350 = vld [vmem:[#allocation10 + $0x20] sm:$0xf]
    %v351 = vld [vmem:[#allocation10 + $0x24] sm:$0xf]
    %v352 = vld [vmem:[#allocation10 + $0x28] sm:$0xf]
    %v353 = vld [vmem:[#allocation10 + $0x2c] sm:$0xf]
    %v354 = vld [vmem:[#allocation10 + $0x30] sm:$0xf]
    %v355 = vld [vmem:[#allocation10 + $0x34] sm:$0xf]
    %v356 = vld [vmem:[#allocation10 + $0x38] sm:$0xf]
    %v357 = vld [vmem:[#allocation10 + $0x3c] sm:$0xf]
    %v358 = vld [vmem:[%s101] sm:$0x1]
    %v360 = vlaneseq
    %v361 = vshrl.u32 %v360, 7
    %v362 = vsub.s32 0, %v361
    %v363 = vrot.slane %v358, %v362
    %v381 = vunpack.c.l.b16 %v342
    %v382 = vunpack.c.l.b16 %v343
    %v383 = vunpack.c.l.b16 %v344
    %v384 = vunpack.c.l.b16 %v345
    %v385 = vunpack.c.l.b16 %v346
    %v386 = vunpack.c.l.b16 %v347
    %v387 = vunpack.c.l.b16 %v348
    %v388 = vunpack.c.l.b16 %v349
    %v389 = vunpack.c.l.b16 %v350
    %v390 = vunpack.c.l.b16 %v351
    %v391 = vunpack.c.l.b16 %v352
    %v392 = vunpack.c.l.b16 %v353
    %v393 = vunpack.c.l.b16 %v354
    %v394 = vunpack.c.l.b16 %v355
    %v395 = vunpack.c.l.b16 %v356
    %v396 = vunpack.c.l.b16 %v357
    %v397 = vpack.c.b16 %v382, %v381
    %v398 = vpack.c.b16 %v384, %v383
    %v399 = vpack.c.b16 %v386, %v385
    %v400 = vpack.c.b16 %v388, %v387
    %v401 = vpack.c.b16 %v390, %v389
    %v402 = vpack.c.b16 %v392, %v391
    %v403 = vpack.c.b16 %v394, %v393
    %v404 = vpack.c.b16 %v396, %v395
    %413 = vmatprep.subr.bf16.mxu0 0
    %414 = vmatpush1.bf16.msra.mxu0 %v397
    %415 = vmatprep.subr.bf16.mxu0 0
    %416 = vmatpush1.bf16.msra.mxu0 %v398
    %417 = vmatprep.subr.bf16.mxu0 0
    %418 = vmatpush1.bf16.msra.mxu0 %v399
    %419 = vmatprep.subr.bf16.mxu0 0
    %420 = vmatpush1.bf16.msra.mxu0 %v400
    %421 = vmatprep.subr.bf16.mxu0 0
    %422 = vmatpush1.bf16.msra.mxu0 %v401
    %423 = vmatprep.subr.bf16.mxu0 0
    %424 = vmatpush1.bf16.msra.mxu0 %v402
    %425 = vmatprep.subr.bf16.mxu0 0
    %426 = vmatpush1.bf16.msra.mxu0 %v403
    %427 = vmatprep.subr.bf16.mxu0 0
    %428 = vmatpush1.bf16.msra.mxu0 %v404
    %429 = vmatprep.subr.bf16.mxu0 0
    %430 = vmatpush1.bf16.msra.mxu0 0
    %431 = vmatprep.subr.bf16.mxu0 0
    %432 = vmatpush1.bf16.msra.mxu0 0
    %433 = vmatprep.subr.bf16.mxu0 0
    %434 = vmatpush1.bf16.msra.mxu0 0
    %435 = vmatprep.subr.bf16.mxu0 0
    %436 = vmatpush1.bf16.msra.mxu0 0
    %437 = vmatprep.subr.bf16.mxu0 0
    %438 = vmatpush1.bf16.msra.mxu0 0
    %439 = vmatprep.subr.bf16.mxu0 0
    %440 = vmatpush1.bf16.msra.mxu0 0
    %441 = vmatprep.subr.bf16.mxu0 0
    %442 = vmatpush1.bf16.msra.mxu0 0
    %443 = vmatprep.subr.bf16.mxu0 0
    %444 = vmatpush1.bf16.msra.mxu0 0
    %445 = vmatprep.mubr.bf16.mxu0 0
    %446 = vmatmul.mubr.bf16.gmra.mrb[0].mxu0 %v341
    %v447 = vpop.f32.mrb[0].mxu0
    %v448 = vadd.f32 %v363, %v447
    %v449 = vpop.f32.mrb[0].mxu0
    %v450 = vpop.f32.mrb[0].mxu0
    %v451 = vadd.f32 %v363, %v450
    %v452 = vpop.f32.mrb[0].mxu0
    %453 = vdwg.mxu0
    %454 = vst [vmem:[#allocation12] sm:$0xff] %v448
    %455 = vst [vmem:[#allocation12 + $0x8] sm:$0xff] %v451
    // Predicated region
    $region46: #{tpu_custom_call.1} parent=1 // pred_check
      _
    $region47: #{tpu_custom_call.1} parent=1 // pred_check_branch
      %457 = sbr.rel (0) target = $region49
    $region48: #{tpu_custom_call.1} parent=1 // pred_region
      %s459 = ssub.s32 256, 256
      %460 = vsyncadd [#allocation6], %s459
      %s461 = sshll.u32 [#allocation12], 4
      %s462 = int_to_ptr.vmem [resolvable:$true] %s461
      %467 = dma.vmem_to_hbm [thread:$0]  %s462, 256, %s8, [#allocation6], 128, 128, 8
    $region49: #{tpu_custom_call.1} parent=1 // pred_fallthru
      _
    // Predicated region
    $region50: #{tpu_custom_call.1} parent=1 // pred_check
      _
    $region51: #{tpu_custom_call.1} parent=1 // pred_check_branch
      %469 = sbr.rel (0) target = $region53
    $region52: #{tpu_custom_call.1} parent=1 // pred_region
      %470 = dma.done [#allocation6], 256
    $region53: #{tpu_custom_call.1} parent=1 // pred_fallthru
      _
    %471 = vsyncpa [#allocation5], 1
    %472 = vsyncpa [#allocation8], 1
    %473 = vsyncpa [#allocation11], 1
    %474 = vsyncpa [#allocation6], 1

</llo_original>
